<compile_context>
chip_gen: v7x
topology: tpu7x:2x2x1
jax: 0.10.0
libtpu: 0.0.40
codegen_flags: <defaults>
</compile_context>

<pallas_src>
import math
import functools

import jax
import jax.numpy as jnp
from jax.experimental import pallas as pl
from jax.experimental.pallas import tpu as pltpu


_INV_SQRT2 = 1.0 / math.sqrt(2.0)
_SQRT_2_OVER_PI = math.sqrt(2.0 / math.pi)


def _gelu_exact(x):
    # exact GELU (erf) — used on the tiny hoisted ConditionNet path + reference
    return 0.5 * x * (1.0 + jax.lax.erf(x * _INV_SQRT2))


def _gelu_tanh(x):
    # tanh approximation: tanh runs on the EUP (free slot), ~6 VALU ops replace
    # the ~12-16 op erf polynomial.  Max deviation from exact GELU ~3e-4.
    return 0.5 * x * (1.0 + jnp.tanh(_SQRT_2_OVER_PI * (x + 0.044715 * (x * x * x))))


# ----------------------------------------------------------------------------
# Pallas kernel: fused GFM1 + GFM2 + GFM3, channels-first lane-dense tiles
# ----------------------------------------------------------------------------
def _gfm_fused_kernel(x_ref, m_ref,
                      w1x_ref, w1m_ref, t1_ref,
                      w2_ref, t2_ref,
                      w3_ref, t3_ref,
                      o_ref):
    # x_ref  : [1, 3, T] f32   (pixels on the lane axis)
    # m_ref  : [1, 1, T] f32
    # w1x/w1m: [1, 64, 3]/[1, 64, 1] f32  per-batch FiLM-scaled stage-1 weights
    # w2     : [1, 64, 64] bf16, w3: [1, 3, 64] bf16 (per-batch FiLM-scaled)
    # t*     : [1, nf, 1] f32  folded shift (+ conv bias * scale_eff)
    # o_ref  : [1, 3, T] f32
    x = x_ref[0]                                                    # [3, T]
    m = m_ref[0]                                                    # [1, T]

    # stage 1 (K = 3 + 1): f32 dots, negligible MXU cost, best parity
    h = (jnp.dot(w1x_ref[0], x, preferred_element_type=jnp.float32)
         + jnp.dot(w1m_ref[0], m, preferred_element_type=jnp.float32))  # [64, T]
    h = _gelu_tanh(h + t1_ref[0]).astype(jnp.bfloat16)

    # stage 2 (64 x 64): bf16 MXU, f32 accumulation
    h = jnp.dot(w2_ref[0], h, preferred_element_type=jnp.float32)       # [64, T]
    h = _gelu_tanh(h + t2_ref[0]).astype(jnp.bfloat16)

    # stage 3 (3 x 64)
    h = jnp.dot(w3_ref[0], h, preferred_element_type=jnp.float32)       # [3, T]
    o_ref[...] = _gelu_tanh(h + t3_ref[0])[None]


def _pick_tile_hw(HW, B, want):
    """Largest multiple-of-128 exact divisor of HW <= want; shrink for megacore."""
    if HW % 128 != 0:
        return HW                     # full-extent block; no garbage boundary tile
    t = max(128, (min(want, HW) // 128) * 128)
    while HW % t:
        t -= 128
    # v7x megacore balance: make sure both TensorCores get (balanced) work
    while B * (HW // t) < 4 and t > 128:
        nt = t - 128
        while nt > 128 and HW % nt:
            nt -= 128
        if HW % nt:
            break
        t = nt
    return t


def gfm_fused(x_cp, m_cp, w1x, w1m, t1, w2, t2, w3, t3, *, tile_hw=8192):
    """x_cp: [B, 3, HW] f32, m_cp: [B, 1, HW] f32 -> [B, out_ch, HW] f32."""
    B, Cx, HW = x_cp.shape
    out_ch = w3.shape[1]
    t = _pick_tile_hw(HW, B, tile_hw)
    grid = (B, HW // t)

    def bvec(arr):   # per-batch parameter block (full block, indexed by b)
        return pl.BlockSpec((1,) + arr.shape[1:], lambda b, i: (b, 0, 0))

    return pl.pallas_call(
        _gfm_fused_kernel,
        out_shape=jax.ShapeDtypeStruct((B, out_ch, HW), jnp.float32),
        grid=grid,
        in_specs=[
            pl.BlockSpec((1, Cx, t), lambda b, i: (b, 0, i)),
            pl.BlockSpec((1, 1, t), lambda b, i: (b, 0, i)),
            bvec(w1x), bvec(w1m), bvec(t1),
            bvec(w2), bvec(t2),
            bvec(w3), bvec(t3),
        ],
        out_specs=pl.BlockSpec((1, out_ch, t), lambda b, i: (b, 0, i)),
        compiler_params=pltpu.CompilerParams(
            dimension_semantics=("parallel", "parallel"),   # shard across TCs (v7x)
            vmem_limit_bytes=32 * 1024 * 1024,              # safe on v5e/v6e/v7x
        ),
    )(x_cp, m_cp, w1x, w1m, t1, w2, t2, w3, t3)


# ----------------------------------------------------------------------------
# ConditionNet (strided convs, downsampling path) + pooled cond  [hoisted]
# ----------------------------------------------------------------------------
def condnet_forward(x, mask, p):
    """x: [B,3,H,W], mask: [B,1,H,W] -> pooled cond [B, cond_nf]."""
    dn = ("NCHW", "OIHW", "NCHW")
    cx = x.shape[1]
    # conv1(concat(x, mask)) == conv(x, w[:, :cx]) + conv(mask, w[:, cx:])
    # (avoids the full-resolution concat HBM round trip)
    h = (jax.lax.conv_general_dilated(x, p["cw1"][:, :cx], (2, 2), ((1, 1), (1, 1)),
                                      dimension_numbers=dn)
         + jax.lax.conv_general_dilated(mask, p["cw1"][:, cx:], (2, 2), ((1, 1), (1, 1)),
                                        dimension_numbers=dn))
    h = _gelu_exact(h + p["cb1"][None, :, None, None])
    for w, b in ((p["cw2"], p["cb2"]), (p["cw3"], p["cb3"])):
        h = jax.lax.conv_general_dilated(h, w, (2, 2), ((1, 1), (1, 1)),
                                         dimension_numbers=dn)
        h = _gelu_exact(h + b[None, :, None, None])
    return jnp.mean(h, axis=(2, 3))          # AdaptiveAvgPool2d(1)


def _film_fold(cond, p, idx, *, dtype):
    """Fold residual, conv bias AND FiLM scale into per-batch weight / shift.

    feat*scale + shift + feat  with feat = Wx + b  ==  W_eff x + t_eff, where
    W_eff = (scale+1) * W (row-scaled),  t_eff = b*(scale+1) + shift.
    """
    scale = cond @ p[f"wsc{idx}"] + p[f"bsc{idx}"]           # [B, nf]
    shift = cond @ p[f"wsh{idx}"] + p[f"bsh{idx}"]           # [B, nf]
    s_eff = scale + 1.0
    t_eff = shift + p[f"bc{idx}"] * s_eff                     # [B, nf]
    w_eff = s_eff[:, :, None] * p[f"wc{idx}"][None]           # [B, nf, in_nf]
    return w_eff.astype(dtype), t_eff[:, :, None]             # [B,nf,in], [B,nf,1]


# ----------------------------------------------------------------------------
# full forward
# ----------------------------------------------------------------------------
@functools.partial(jax.jit, static_argnames=("tile_hw",))
def illumination_corrector(x_nchw, mask_nchw, params, *, tile_hw=8192):
    B, Cx, H, W = x_nchw.shape

    cond = condnet_forward(x_nchw, mask_nchw, params)          # [B, cond_nf]

    w1, t1 = _film_fold(cond, params, 1, dtype=jnp.float32)    # stage-1 kept f32
    w2, t2 = _film_fold(cond, params, 2, dtype=jnp.bfloat16)
    w3, t3 = _film_fold(cond, params, 3, dtype=jnp.bfloat16)
    w1x, w1m = w1[:, :, :Cx], w1[:, :, Cx:]

    x_cp = x_nchw.reshape(B, Cx, H * W)                        # views, no HBM copy
    m_cp = mask_nchw.reshape(B, 1, H * W)
    out = gfm_fused(x_cp, m_cp, w1x, w1m, t1, w2, t2, w3, t3, tile_hw=tile_hw)
    return out.reshape(B, -1, H, W)                            # already NCHW


# ----------------------------------------------------------------------------
# deterministic synthetic parameters
# ----------------------------------------------------------------------------
def init_params(key, in_ch=4, out_ch=3, base_nf=64, cond_nf=32):
    ks = iter(jax.random.split(key, 32))
    p = {}

    def conv_w(out_c, in_c, k):
        fan_in = in_c * k * k
        return jax.random.normal(next(ks), (out_c, in_c, k, k),
                                 jnp.float32) / math.sqrt(fan_in)

    def bias(n):
        return 0.01 * jax.random.normal(next(ks), (n,), jnp.float32)

    # ConditionNet (torch OIHW layout)
    p["cw1"], p["cb1"] = conv_w(cond_nf, in_ch, 7), bias(cond_nf)
    p["cw2"], p["cb2"] = conv_w(cond_nf, cond_nf, 3), bias(cond_nf)
    p["cw3"], p["cb3"] = conv_w(cond_nf, cond_nf, 3), bias(cond_nf)

    def gfm(idx, in_nf, nf):
        # 1x1 convs as dense matrices:
        #   wc  : [nf, in_nf]    (torch weight[:, :, 0, 0]; used as W @ x per pixel)
        #   wsc / wsh : [cond_nf, nf]  (used as cond @ W)
        p[f"wc{idx}"] = jax.random.normal(next(ks), (nf, in_nf),
                                          jnp.float32) / math.sqrt(in_nf)
        p[f"bc{idx}"] = bias(nf)
        p[f"wsc{idx}"] = jax.random.normal(next(ks), (cond_nf, nf),
                                           jnp.float32) / math.sqrt(cond_nf)
        p[f"bsc{idx}"] = bias(nf)
        p[f"wsh{idx}"] = jax.random.normal(next(ks), (cond_nf, nf),
                                           jnp.float32) / math.sqrt(cond_nf)
        p[f"bsh{idx}"] = bias(nf)

    gfm(1, in_ch, base_nf)
    gfm(2, base_nf, base_nf)
    gfm(3, base_nf, out_ch)
    return p


# ----------------------------------------------------------------------------
# pure-JAX reference (f32, exact GELU, unfolded FiLM) for validation
# ----------------------------------------------------------------------------
def reference_forward(x_nchw, mask_nchw, p):
    xcat = jnp.concatenate([x_nchw, mask_nchw], axis=1)
    dn = ("NCHW", "OIHW", "NCHW")
    h = xcat
    for w, b in ((p["cw1"], p["cb1"]), (p["cw2"], p["cb2"]), (p["cw3"], p["cb3"])):
        h = jax.lax.conv_general_dilated(h, w, (2, 2), ((1, 1), (1, 1)),
                                         dimension_numbers=dn)
        h = _gelu_exact(h + b[None, :, None, None])
    cond = jnp.mean(h, axis=(2, 3))                            # [B, cond_nf]

    B, Cin, H, W = xcat.shape
    h = xcat.reshape(B, Cin, H * W)

    def gfm(h, idx):
        feat = jnp.einsum("oi,bip->bop", p[f"wc{idx}"], h) + p[f"bc{idx}"][None, :, None]
        scale = (cond @ p[f"wsc{idx}"] + p[f"bsc{idx}"])[:, :, None]
        shift = (cond @ p[f"wsh{idx}"] + p[f"bsh{idx}"])[:, :, None]
        return _gelu_exact(feat * scale + shift + feat)

    h = gfm(h, 1)
    h = gfm(h, 2)
    h = gfm(h, 3)
    return h.reshape(B, -1, H, W)


if __name__ == "__main__":
    key = jax.random.PRNGKey(0)
    k_x, k_m, k_p = jax.random.split(key, 3)

    B, H, W = 2, 16, 16
    x = jax.random.normal(k_x, (B, 3, H, W), jnp.float32)
    shadow_mask = jax.random.uniform(k_m, (B, 1, H, W), jnp.float32)
    params = init_params(k_p, in_ch=4, out_ch=3, base_nf=64, cond_nf=32)

    # HW = 256 here: the tile picker chooses t=128 so the (B, HW/t) = (2, 2) grid
    # is exercised; realistic resolutions use the 8192 default tile.
    out = illumination_corrector(x, shadow_mask, params)
    out = jax.block_until_ready(out)
    assert out.shape == (B, 3, H, W), out.shape
    assert bool(jnp.all(jnp.isfinite(out)))

    ref = reference_forward(x, shadow_mask, params)
    err = float(jnp.max(jnp.abs(out - ref)))
    assert err < 0.1, f"max abs error vs f32 reference: {err}"

    print("KERNEL_OK")
</pallas_src>

<mosaic_0001>
module attributes {stable_mosaic.version = 11 : i64} {
  func.func @_gfm_fused_kernel(%arg0: i32, %arg1: i32, %arg2: memref<1x3x128xf32, #tpu.memory_space<vmem>>, %arg3: memref<1x1x128xf32, #tpu.memory_space<vmem>>, %arg4: memref<1x64x3xf32, #tpu.memory_space<vmem>>, %arg5: memref<1x64x1xf32, #tpu.memory_space<vmem>>, %arg6: memref<1x64x1xf32, #tpu.memory_space<vmem>>, %arg7: memref<1x64x64xbf16, #tpu.memory_space<vmem>>, %arg8: memref<1x64x1xf32, #tpu.memory_space<vmem>>, %arg9: memref<1x3x64xbf16, #tpu.memory_space<vmem>>, %arg10: memref<1x3x1xf32, #tpu.memory_space<vmem>>, %arg11: memref<1x3x128xf32, #tpu.memory_space<vmem>>) attributes {dimension_semantics = [#tpu.dimension_semantics<parallel>, #tpu.dimension_semantics<parallel>], iteration_bounds = array<i64: 2, 2>, scalar_prefetch = 0 : i64, scratch_operands = 0 : i64, tpu.core_type = #tpu.core_type<tc>, window_params = [{transform_indices = @transform_0, window_bounds = array<i64: 1, 3, 128>}, {transform_indices = @transform_1, window_bounds = array<i64: 1, 1, 128>}, {transform_indices = @transform_2, window_bounds = array<i64: 1, 64, 3>}, {transform_indices = @transform_3, window_bounds = array<i64: 1, 64, 1>}, {transform_indices = @transform_4, window_bounds = array<i64: 1, 64, 1>}, {transform_indices = @transform_5, window_bounds = array<i64: 1, 64, 64>}, {transform_indices = @transform_6, window_bounds = array<i64: 1, 64, 1>}, {transform_indices = @transform_7, window_bounds = array<i64: 1, 3, 64>}, {transform_indices = @transform_8, window_bounds = array<i64: 1, 3, 1>}, {transform_indices = @transform_9, window_bounds = array<i64: 1, 3, 128>}]} {
    %c0 = arith.constant 0 : index
    %c0_0 = arith.constant 0 : index
    %c0_1 = arith.constant 0 : index
    %0 = vector.load %arg2[%c0, %c0_0, %c0_1] : memref<1x3x128xf32, #tpu.memory_space<vmem>>, vector<1x3x128xf32>
    %1 = vector.shape_cast %0 : vector<1x3x128xf32> to vector<3x128xf32>
    %c0_2 = arith.constant 0 : index
    %c0_3 = arith.constant 0 : index
    %c0_4 = arith.constant 0 : index
    %2 = vector.load %arg3[%c0_2, %c0_3, %c0_4] : memref<1x1x128xf32, #tpu.memory_space<vmem>>, vector<1x1x128xf32>
    %3 = vector.shape_cast %2 : vector<1x1x128xf32> to vector<1x128xf32>
    %c0_5 = arith.constant 0 : index
    %c0_6 = arith.constant 0 : index
    %c0_7 = arith.constant 0 : index
    %4 = vector.load %arg4[%c0_5, %c0_6, %c0_7] : memref<1x64x3xf32, #tpu.memory_space<vmem>>, vector<1x64x3xf32>
    %5 = vector.shape_cast %4 : vector<1x64x3xf32> to vector<64x3xf32>
    %cst = arith.constant dense<0.000000e+00> : vector<64x128xf32>
    %6 = tpu.matmul %5, %1, %cst {dimension_numbers = #tpu.dot_dimension_numbers<[1], [0], [0], [1], [0, 0, 1, 1], [], []>} : vector<64x3xf32>, vector<3x128xf32>, vector<64x128xf32> -> vector<64x128xf32>
    %c0_8 = arith.constant 0 : index
    %c0_9 = arith.constant 0 : index
    %c0_10 = arith.constant 0 : index
    %7 = vector.load %arg5[%c0_8, %c0_9, %c0_10] : memref<1x64x1xf32, #tpu.memory_space<vmem>>, vector<1x64x1xf32>
    %8 = vector.shape_cast %7 : vector<1x64x1xf32> to vector<64x1xf32>
    %cst_11 = arith.constant dense<0.000000e+00> : vector<64x128xf32>
    %9 = tpu.matmul %8, %3, %cst_11 {dimension_numbers = #tpu.dot_dimension_numbers<[1], [0], [0], [1], [0, 0, 1, 1], [], []>} : vector<64x1xf32>, vector<1x128xf32>, vector<64x128xf32> -> vector<64x128xf32>
    %10 = arith.addf %6, %9 : vector<64x128xf32>
    %c0_12 = arith.constant 0 : index
    %c0_13 = arith.constant 0 : index
    %c0_14 = arith.constant 0 : index
    %11 = vector.load %arg6[%c0_12, %c0_13, %c0_14] : memref<1x64x1xf32, #tpu.memory_space<vmem>>, vector<1x64x1xf32>
    %12 = vector.shape_cast %11 : vector<1x64x1xf32> to vector<64x1xf32>
    %13 = vector.broadcast %12 : vector<64x1xf32> to vector<64x128xf32>
    %14 = arith.addf %10, %13 : vector<64x128xf32>
    %cst_15 = arith.constant 5.000000e-01 : f32
    %15 = vector.broadcast %cst_15 : f32 to vector<64x128xf32>
    %16 = arith.mulf %15, %14 : vector<64x128xf32>
    %17 = arith.mulf %14, %14 : vector<64x128xf32>
    %18 = arith.mulf %17, %14 : vector<64x128xf32>
    %cst_16 = arith.constant 4.471500e-02 : f32
    %19 = vector.broadcast %cst_16 : f32 to vector<64x128xf32>
    %20 = arith.mulf %19, %18 : vector<64x128xf32>
    %21 = arith.addf %14, %20 : vector<64x128xf32>
    %cst_17 = arith.constant 0.797884583 : f32
    %22 = vector.broadcast %cst_17 : f32 to vector<64x128xf32>
    %23 = arith.mulf %22, %21 : vector<64x128xf32>
    %24 = math.tanh %23 : vector<64x128xf32>
    %cst_18 = arith.constant 1.000000e+00 : f32
    %25 = vector.broadcast %cst_18 : f32 to vector<64x128xf32>
    %26 = arith.addf %25, %24 : vector<64x128xf32>
    %27 = arith.mulf %16, %26 : vector<64x128xf32>
    %28 = arith.truncf %27 : vector<64x128xf32> to vector<64x128xbf16>
    %c0_19 = arith.constant 0 : index
    %c0_20 = arith.constant 0 : index
    %c0_21 = arith.constant 0 : index
    %29 = vector.load %arg7[%c0_19, %c0_20, %c0_21] : memref<1x64x64xbf16, #tpu.memory_space<vmem>>, vector<1x64x64xbf16>
    %30 = vector.shape_cast %29 : vector<1x64x64xbf16> to vector<64x64xbf16>
    %cst_22 = arith.constant dense<0.000000e+00> : vector<64x128xf32>
    %31 = tpu.matmul %30, %28, %cst_22 {dimension_numbers = #tpu.dot_dimension_numbers<[1], [0], [0], [1], [0, 0, 1, 1], [], []>} : vector<64x64xbf16>, vector<64x128xbf16>, vector<64x128xf32> -> vector<64x128xf32>
    %c0_23 = arith.constant 0 : index
    %c0_24 = arith.constant 0 : index
    %c0_25 = arith.constant 0 : index
    %32 = vector.load %arg8[%c0_23, %c0_24, %c0_25] : memref<1x64x1xf32, #tpu.memory_space<vmem>>, vector<1x64x1xf32>
    %33 = vector.shape_cast %32 : vector<1x64x1xf32> to vector<64x1xf32>
    %34 = vector.broadcast %33 : vector<64x1xf32> to vector<64x128xf32>
    %35 = arith.addf %31, %34 : vector<64x128xf32>
    %cst_26 = arith.constant 5.000000e-01 : f32
    %36 = vector.broadcast %cst_26 : f32 to vector<64x128xf32>
    %37 = arith.mulf %36, %35 : vector<64x128xf32>
    %38 = arith.mulf %35, %35 : vector<64x128xf32>
    %39 = arith.mulf %38, %35 : vector<64x128xf32>
    %cst_27 = arith.constant 4.471500e-02 : f32
    %40 = vector.broadcast %cst_27 : f32 to vector<64x128xf32>
    %41 = arith.mulf %40, %39 : vector<64x128xf32>
    %42 = arith.addf %35, %41 : vector<64x128xf32>
    %cst_28 = arith.constant 0.797884583 : f32
    %43 = vector.broadcast %cst_28 : f32 to vector<64x128xf32>
    %44 = arith.mulf %43, %42 : vector<64x128xf32>
    %45 = math.tanh %44 : vector<64x128xf32>
    %cst_29 = arith.constant 1.000000e+00 : f32
    %46 = vector.broadcast %cst_29 : f32 to vector<64x128xf32>
    %47 = arith.addf %46, %45 : vector<64x128xf32>
    %48 = arith.mulf %37, %47 : vector<64x128xf32>
    %49 = arith.truncf %48 : vector<64x128xf32> to vector<64x128xbf16>
    %c0_30 = arith.constant 0 : index
    %c0_31 = arith.constant 0 : index
    %c0_32 = arith.constant 0 : index
    %50 = vector.load %arg9[%c0_30, %c0_31, %c0_32] : memref<1x3x64xbf16, #tpu.memory_space<vmem>>, vector<1x3x64xbf16>
    %51 = vector.shape_cast %50 : vector<1x3x64xbf16> to vector<3x64xbf16>
    %cst_33 = arith.constant dense<0.000000e+00> : vector<3x128xf32>
    %52 = tpu.matmul %51, %49, %cst_33 {dimension_numbers = #tpu.dot_dimension_numbers<[1], [0], [0], [1], [0, 0, 1, 1], [], []>} : vector<3x64xbf16>, vector<64x128xbf16>, vector<3x128xf32> -> vector<3x128xf32>
    %c0_34 = arith.constant 0 : index
    %c0_35 = arith.constant 0 : index
    %c0_36 = arith.constant 0 : index
    %53 = vector.load %arg10[%c0_34, %c0_35, %c0_36] : memref<1x3x1xf32, #tpu.memory_space<vmem>>, vector<1x3x1xf32>
    %54 = vector.shape_cast %53 : vector<1x3x1xf32> to vector<3x1xf32>
    %55 = vector.broadcast %54 : vector<3x1xf32> to vector<3x128xf32>
    %56 = arith.addf %52, %55 : vector<3x128xf32>
    %cst_37 = arith.constant 5.000000e-01 : f32
    %57 = vector.broadcast %cst_37 : f32 to vector<3x128xf32>
    %58 = arith.mulf %57, %56 : vector<3x128xf32>
    %59 = arith.mulf %56, %56 : vector<3x128xf32>
    %60 = arith.mulf %59, %56 : vector<3x128xf32>
    %cst_38 = arith.constant 4.471500e-02 : f32
    %61 = vector.broadcast %cst_38 : f32 to vector<3x128xf32>
    %62 = arith.mulf %61, %60 : vector<3x128xf32>
    %63 = arith.addf %56, %62 : vector<3x128xf32>
    %cst_39 = arith.constant 0.797884583 : f32
    %64 = vector.broadcast %cst_39 : f32 to vector<3x128xf32>
    %65 = arith.mulf %64, %63 : vector<3x128xf32>
    %66 = math.tanh %65 : vector<3x128xf32>
    %cst_40 = arith.constant 1.000000e+00 : f32
    %67 = vector.broadcast %cst_40 : f32 to vector<3x128xf32>
    %68 = arith.addf %67, %66 : vector<3x128xf32>
    %69 = arith.mulf %58, %68 : vector<3x128xf32>
    %70 = vector.shape_cast %69 : vector<3x128xf32> to vector<1x3x128xf32>
    %c0_41 = arith.constant 0 : index
    %c0_42 = arith.constant 0 : index
    %c0_43 = arith.constant 0 : index
    %71 = vector.load %arg11[%c0_41, %c0_42, %c0_43] : memref<1x3x128xf32, #tpu.memory_space<vmem>>, vector<1x3x128xf32>
    tpu.vector_store %arg11[%c0_41, %c0_42, %c0_43], %70 {strides = array<i32>} : memref<1x3x128xf32, #tpu.memory_space<vmem>>, vector<1x3x128xf32>,
    return
  }
  func.func @transform_0(%arg0: i32, %arg1: i32) -> (i32, i32, i32) {
    %c0_i32 = arith.constant 0 : i32
    %c0_i32_0 = arith.constant 0 : i32
    return %arg0, %c0_i32, %arg1 : i32, i32, i32
  }
  func.func @transform_1(%arg0: i32, %arg1: i32) -> (i32, i32, i32) {
    %c0_i32 = arith.constant 0 : i32
    %c0_i32_0 = arith.constant 0 : i32
    return %arg0, %c0_i32, %arg1 : i32, i32, i32
  }
  func.func @transform_2(%arg0: i32, %arg1: i32) -> (i32, i32, i32) {
    %c0_i32 = arith.constant 0 : i32
    %c0_i32_0 = arith.constant 0 : i32
    %c0_i32_1 = arith.constant 0 : i32
    return %arg0, %c0_i32, %c0_i32_0 : i32, i32, i32
  }
  func.func @transform_3(%arg0: i32, %arg1: i32) -> (i32, i32, i32) {
    %c0_i32 = arith.constant 0 : i32
    %c0_i32_0 = arith.constant 0 : i32
    %c0_i32_1 = arith.constant 0 : i32
    return %arg0, %c0_i32, %c0_i32_0 : i32, i32, i32
  }
  func.func @transform_4(%arg0: i32, %arg1: i32) -> (i32, i32, i32) {
    %c0_i32 = arith.constant 0 : i32
    %c0_i32_0 = arith.constant 0 : i32
    %c0_i32_1 = arith.constant 0 : i32
    return %arg0, %c0_i32, %c0_i32_0 : i32, i32, i32
  }
  func.func @transform_5(%arg0: i32, %arg1: i32) -> (i32, i32, i32) {
    %c0_i32 = arith.constant 0 : i32
    %c0_i32_0 = arith.constant 0 : i32
    %c0_i32_1 = arith.constant 0 : i32
    return %arg0, %c0_i32, %c0_i32_0 : i32, i32, i32
  }
  func.func @transform_6(%arg0: i32, %arg1: i32) -> (i32, i32, i32) {
    %c0_i32 = arith.constant 0 : i32
    %c0_i32_0 = arith.constant 0 : i32
    %c0_i32_1 = arith.constant 0 : i32
    return %arg0, %c0_i32, %c0_i32_0 : i32, i32, i32
  }
  func.func @transform_7(%arg0: i32, %arg1: i32) -> (i32, i32, i32) {
    %c0_i32 = arith.constant 0 : i32
    %c0_i32_0 = arith.constant 0 : i32
    %c0_i32_1 = arith.constant 0 : i32
    return %arg0, %c0_i32, %c0_i32_0 : i32, i32, i32
  }
  func.func @transform_8(%arg0: i32, %arg1: i32) -> (i32, i32, i32) {
    %c0_i32 = arith.constant 0 : i32
    %c0_i32_0 = arith.constant 0 : i32
    %c0_i32_1 = arith.constant 0 : i32
    return %arg0, %c0_i32, %c0_i32_0 : i32, i32, i32
  }
  func.func @transform_9(%arg0: i32, %arg1: i32) -> (i32, i32, i32) {
    %c0_i32 = arith.constant 0 : i32
    %c0_i32_0 = arith.constant 0 : i32
    return %arg0, %c0_i32, %arg1 : i32, i32, i32
  }
}

</mosaic_0001>

<llo_original>
// kernel: illumination_corrector.1
$region0: #{illumination_corrector.1}
  #allocation0 [shape = 'u32[]', space=smem, size = 0x4, offset = 0x4, fixed_abs, tag = 'smem constant byte address 0x4 - core index']
  #allocation1 [shape = 'u32[144,128]{1,0:T(1,128)}', space=vmem, size = 0x12000, scoped, tag = 'internal scratch']
  %s0 = inlined_call_operand.vmem [shape: f32[2,3,256], index: 0, kind: input, shape index: {}]
  %s1 = inlined_call_operand.vmem [shape: f32[2,1,256], index: 1, kind: input, shape index: {}]
  %s2 = inlined_call_operand.vmem [shape: f32[2,64,3], index: 2, kind: input, shape index: {}]
  %s3 = inlined_call_operand.vmem [shape: f32[2,64,1], index: 3, kind: input, shape index: {}]
  %s4 = inlined_call_operand.vmem [shape: f32[2,64,1], index: 4, kind: input, shape index: {}]
  %s5 = inlined_call_operand.vmem [shape: bf16[2,64,64], index: 5, kind: input, shape index: {}]
  %s6 = inlined_call_operand.vmem [shape: f32[2,64,1], index: 6, kind: input, shape index: {}]
  %s7 = inlined_call_operand.vmem [shape: bf16[2,3,64], index: 7, kind: input, shape index: {}]
  %s8 = inlined_call_operand.vmem [shape: f32[2,3,1], index: 8, kind: input, shape index: {}]
  %s9 = inlined_call_operand.vmem [shape: f32[2,3,256], index: 9, kind: output, shape index: {}]
  %s10 = sld [smem:[#allocation0]]
  $region69: #{illumination_corrector.1} parent=0
    _
  %s12 = ssub.s32 1, %s10
  %s13 = scalar_select 0, %s12, %s10
  loop: start=0, step=1, limit=6
  $region2: #{illumination_corrector.1} parent=0 // loop_pre_header
    _
  $region3: #{illumination_corrector.1} parent=0 // loop_header
    %s15 = sphi 0, %s19
    %p16 = scmp.ge.s32.totalorder %s15, 6
    %s22 = sphi 0, %s34
    %s23 = sphi 0, %s30
    %s24 = sphi 0, %s22
    %s25 = sphi 0, %s23
    %s26 = sphi 0, %s24
    %s27 = sphi 0, %s25
    %s39 = sphi 0, %s41
    %s42 = sphi 0, %s39
    %s43 = sphi 0, %s42
    %s59 = sphi 0, %s43
    %s67 = sphi 0, %s69
    %s70 = sphi 0, %s67
    %s71 = sphi 0, %s70
    %s87 = sphi 0, %s71
    %s93 = sphi 0, %s95
    %s96 = sphi 0, %s93
    %s97 = sphi 0, %s96
    %s113 = sphi 0, %s97
    %s119 = sphi 0, %s121
    %s122 = sphi 0, %s119
    %s123 = sphi 0, %s122
    %s139 = sphi 0, %s123
    %s145 = sphi 0, %s147
    %s148 = sphi 0, %s145
    %s149 = sphi 0, %s148
    %s165 = sphi 0, %s149
    %s171 = sphi 0, %s173
    %s174 = sphi 0, %s171
    %s175 = sphi 0, %s174
    %s191 = sphi 0, %s175
    %s197 = sphi 0, %s199
    %s200 = sphi 0, %s197
    %s201 = sphi 0, %s200
    %s217 = sphi 0, %s201
    %s223 = sphi 0, %s225
    %s226 = sphi 0, %s223
    %s227 = sphi 0, %s226
    %s243 = sphi 0, %s227
    %s249 = sphi 0, %s251
    %s252 = sphi 0, %s249
    %s253 = sphi 0, %s252
    %s269 = sphi 0, %s253
    %s277 = sphi 0, %s279
    %s280 = sphi 0, %s277
    %s281 = sphi 0, %s280
    %s297 = sphi 0, %s281
  $region4: #{illumination_corrector.1} parent=0 // loop_header_branch
    %18 = sbr.rel (%p16) target = $region8
  $region5: #{illumination_corrector.1} parent=0 // loop_body
    %s20 = ssub.s32 %s15, 1
    %s21 = ssub.s32 %s15, 2
    %s28 = sadd.s32 1, %s23
    %p29 = scmp.ge.s32.totalorder %s28, 2
    %s30 = scalar_select %p29, 0, %s28
    %s31 = sadd.s32 1, %s22
    %s32 = scalar_select %p29, %s31, %s22
    %p33 = scmp.ge.s32.totalorder %s32, 2
    %s34 = scalar_select %p33, 0, %s32
    %s35 = ssub.s32 %s22, %s34
    %s36 = ssub.s32 %s23, %s30
    %s37 = sor.u32 %s35, %s36
    %p38 = scmp.eq.s32.totalorder %s37, 0
    %s40 = sadd.s32 %s39, 1
    %s41 = scalar_select %p38, %s39, %s40
    %p44 = pneg %p38
    %p45 = scmp.eq.s32.totalorder %s15, 3
    %p46 = por %p44, %p45
    %p47 = scmp.ne.s32.totalorder %s39, %s42
    %p48 = scmp.eq.s32.totalorder %s15, 0
    %p49 = por %p47, %p48
    %p50 = scmp.ne.s32.totalorder %s39, %s42
    %p51 = scmp.eq.s32.totalorder %s20, 3
    %p52 = por %p50, %p51
    %p53 = scmp.ne.s32.totalorder %s42, %s43
    %p54 = scmp.eq.s32.totalorder %s20, 0
    %p55 = por %p53, %p54
    %p56 = scmp.ne.s32.totalorder %s42, %s43
    %p57 = scmp.eq.s32.totalorder %s21, 3
    %p58 = por %p56, %p57
    %p60 = scmp.ne.s32.totalorder %s43, %s59
    %p61 = scmp.eq.s32.totalorder %s21, 0
    %p62 = por %p60, %p61
    %s63 = ssub.s32 %s22, %s34
    %s64 = ssub.s32 %s23, %s30
    %s65 = sor.u32 %s63, %s64
    %p66 = scmp.eq.s32.totalorder %s65, 0
    %s68 = sadd.s32 %s67, 1
    %s69 = scalar_select %p66, %s67, %s68
    %p72 = pneg %p66
    %p73 = scmp.eq.s32.totalorder %s15, 3
    %p74 = por %p72, %p73
    %p75 = scmp.ne.s32.totalorder %s67, %s70
    %p76 = scmp.eq.s32.totalorder %s15, 0
    %p77 = por %p75, %p76
    %p78 = scmp.ne.s32.totalorder %s67, %s70
    %p79 = scmp.eq.s32.totalorder %s20, 3
    %p80 = por %p78, %p79
    %p81 = scmp.ne.s32.totalorder %s70, %s71
    %p82 = scmp.eq.s32.totalorder %s20, 0
    %p83 = por %p81, %p82
    %p84 = scmp.ne.s32.totalorder %s70, %s71
    %p85 = scmp.eq.s32.totalorder %s21, 3
    %p86 = por %p84, %p85
    %p88 = scmp.ne.s32.totalorder %s71, %s87
    %p89 = scmp.eq.s32.totalorder %s21, 0
    %p90 = por %p88, %p89
    %s91 = ssub.s32 %s22, %s34
    %p92 = scmp.eq.s32.totalorder %s91, 0
    %s94 = sadd.s32 %s93, 1
    %s95 = scalar_select %p92, %s93, %s94
    %p98 = pneg %p92
    %p99 = scmp.eq.s32.totalorder %s15, 3
    %p100 = por %p98, %p99
    %p101 = scmp.ne.s32.totalorder %s93, %s96
    %p102 = scmp.eq.s32.totalorder %s15, 0
    %p103 = por %p101, %p102
    %p104 = scmp.ne.s32.totalorder %s93, %s96
    %p105 = scmp.eq.s32.totalorder %s20, 3
    %p106 = por %p104, %p105
    %p107 = scmp.ne.s32.totalorder %s96, %s97
    %p108 = scmp.eq.s32.totalorder %s20, 0
    %p109 = por %p107, %p108
    %p110 = scmp.ne.s32.totalorder %s96, %s97
    %p111 = scmp.eq.s32.totalorder %s21, 3
    %p112 = por %p110, %p111
    %p114 = scmp.ne.s32.totalorder %s97, %s113
    %p115 = scmp.eq.s32.totalorder %s21, 0
    %p116 = por %p114, %p115
    %s117 = ssub.s32 %s22, %s34
    %p118 = scmp.eq.s32.totalorder %s117, 0
    %s120 = sadd.s32 %s119, 1
    %s121 = scalar_select %p118, %s119, %s120
    %p124 = pneg %p118
    %p125 = scmp.eq.s32.totalorder %s15, 3
    %p126 = por %p124, %p125
    %p127 = scmp.ne.s32.totalorder %s119, %s122
    %p128 = scmp.eq.s32.totalorder %s15, 0
    %p129 = por %p127, %p128
    %p130 = scmp.ne.s32.totalorder %s119, %s122
    %p131 = scmp.eq.s32.totalorder %s20, 3
    %p132 = por %p130, %p131
    %p133 = scmp.ne.s32.totalorder %s122, %s123
    %p134 = scmp.eq.s32.totalorder %s20, 0
    %p135 = por %p133, %p134
    %p136 = scmp.ne.s32.totalorder %s122, %s123
    %p137 = scmp.eq.s32.totalorder %s21, 3
    %p138 = por %p136, %p137
    %p140 = scmp.ne.s32.totalorder %s123, %s139
    %p141 = scmp.eq.s32.totalorder %s21, 0
    %p142 = por %p140, %p141
    %s143 = ssub.s32 %s22, %s34
    %p144 = scmp.eq.s32.totalorder %s143, 0
    %s146 = sadd.s32 %s145, 1
    %s147 = scalar_select %p144, %s145, %s146
    %p150 = pneg %p144
    %p151 = scmp.eq.s32.totalorder %s15, 3
    %p152 = por %p150, %p151
    %p153 = scmp.ne.s32.totalorder %s145, %s148
    %p154 = scmp.eq.s32.totalorder %s15, 0
    %p155 = por %p153, %p154
    %p156 = scmp.ne.s32.totalorder %s145, %s148
    %p157 = scmp.eq.s32.totalorder %s20, 3
    %p158 = por %p156, %p157
    %p159 = scmp.ne.s32.totalorder %s148, %s149
    %p160 = scmp.eq.s32.totalorder %s20, 0
    %p161 = por %p159, %p160
    %p162 = scmp.ne.s32.totalorder %s148, %s149
    %p163 = scmp.eq.s32.totalorder %s21, 3
    %p164 = por %p162, %p163
    %p166 = scmp.ne.s32.totalorder %s149, %s165
    %p167 = scmp.eq.s32.totalorder %s21, 0
    %p168 = por %p166, %p167
    %s169 = ssub.s32 %s22, %s34
    %p170 = scmp.eq.s32.totalorder %s169, 0
    %s172 = sadd.s32 %s171, 1
    %s173 = scalar_select %p170, %s171, %s172
    %p176 = pneg %p170
    %p177 = scmp.eq.s32.totalorder %s15, 3
    %p178 = por %p176, %p177
    %p179 = scmp.ne.s32.totalorder %s171, %s174
    %p180 = scmp.eq.s32.totalorder %s15, 0
    %p181 = por %p179, %p180
    %p182 = scmp.ne.s32.totalorder %s171, %s174
    %p183 = scmp.eq.s32.totalorder %s20, 3
    %p184 = por %p182, %p183
    %p185 = scmp.ne.s32.totalorder %s174, %s175
    %p186 = scmp.eq.s32.totalorder %s20, 0
    %p187 = por %p185, %p186
    %p188 = scmp.ne.s32.totalorder %s174, %s175
    %p189 = scmp.eq.s32.totalorder %s21, 3
    %p190 = por %p188, %p189
    %p192 = scmp.ne.s32.totalorder %s175, %s191
    %p193 = scmp.eq.s32.totalorder %s21, 0
    %p194 = por %p192, %p193
    %s195 = ssub.s32 %s22, %s34
    %p196 = scmp.eq.s32.totalorder %s195, 0
    %s198 = sadd.s32 %s197, 1
    %s199 = scalar_select %p196, %s197, %s198
    %p202 = pneg %p196
    %p203 = scmp.eq.s32.totalorder %s15, 3
    %p204 = por %p202, %p203
    %p205 = scmp.ne.s32.totalorder %s197, %s200
    %p206 = scmp.eq.s32.totalorder %s15, 0
    %p207 = por %p205, %p206
    %p208 = scmp.ne.s32.totalorder %s197, %s200
    %p209 = scmp.eq.s32.totalorder %s20, 3
    %p210 = por %p208, %p209
    %p211 = scmp.ne.s32.totalorder %s200, %s201
    %p212 = scmp.eq.s32.totalorder %s20, 0
    %p213 = por %p211, %p212
    %p214 = scmp.ne.s32.totalorder %s200, %s201
    %p215 = scmp.eq.s32.totalorder %s21, 3
    %p216 = por %p214, %p215
    %p218 = scmp.ne.s32.totalorder %s201, %s217
    %p219 = scmp.eq.s32.totalorder %s21, 0
    %p220 = por %p218, %p219
    %s221 = ssub.s32 %s22, %s34
    %p222 = scmp.eq.s32.totalorder %s221, 0
    %s224 = sadd.s32 %s223, 1
    %s225 = scalar_select %p222, %s223, %s224
    %p228 = pneg %p222
    %p229 = scmp.eq.s32.totalorder %s15, 3
    %p230 = por %p228, %p229
    %p231 = scmp.ne.s32.totalorder %s223, %s226
    %p232 = scmp.eq.s32.totalorder %s15, 0
    %p233 = por %p231, %p232
    %p234 = scmp.ne.s32.totalorder %s223, %s226
    %p235 = scmp.eq.s32.totalorder %s20, 3
    %p236 = por %p234, %p235
    %p237 = scmp.ne.s32.totalorder %s226, %s227
    %p238 = scmp.eq.s32.totalorder %s20, 0
    %p239 = por %p237, %p238
    %p240 = scmp.ne.s32.totalorder %s226, %s227
    %p241 = scmp.eq.s32.totalorder %s21, 3
    %p242 = por %p240, %p241
    %p244 = scmp.ne.s32.totalorder %s227, %s243
    %p245 = scmp.eq.s32.totalorder %s21, 0
    %p246 = por %p244, %p245
    %s247 = ssub.s32 %s22, %s34
    %p248 = scmp.eq.s32.totalorder %s247, 0
    %s250 = sadd.s32 %s249, 1
    %s251 = scalar_select %p248, %s249, %s250
    %p254 = pneg %p248
    %p255 = scmp.eq.s32.totalorder %s15, 3
    %p256 = por %p254, %p255
    %p257 = scmp.ne.s32.totalorder %s249, %s252
    %p258 = scmp.eq.s32.totalorder %s15, 0
    %p259 = por %p257, %p258
    %p260 = scmp.ne.s32.totalorder %s249, %s252
    %p261 = scmp.eq.s32.totalorder %s20, 3
    %p262 = por %p260, %p261
    %p263 = scmp.ne.s32.totalorder %s252, %s253
    %p264 = scmp.eq.s32.totalorder %s20, 0
    %p265 = por %p263, %p264
    %p266 = scmp.ne.s32.totalorder %s252, %s253
    %p267 = scmp.eq.s32.totalorder %s21, 3
    %p268 = por %p266, %p267
    %p270 = scmp.ne.s32.totalorder %s253, %s269
    %p271 = scmp.eq.s32.totalorder %s21, 0
    %p272 = por %p270, %p271
    %s273 = ssub.s32 %s22, %s34
    %s274 = ssub.s32 %s23, %s30
    %s275 = sor.u32 %s273, %s274
    %p276 = scmp.eq.s32.totalorder %s275, 0
    %s278 = sadd.s32 %s277, 1
    %s279 = scalar_select %p276, %s277, %s278
    %p282 = pneg %p276
    %p283 = scmp.eq.s32.totalorder %s15, 3
    %p284 = por %p282, %p283
    %p285 = scmp.ne.s32.totalorder %s277, %s280
    %p286 = scmp.eq.s32.totalorder %s15, 0
    %p287 = por %p285, %p286
    %p288 = scmp.ne.s32.totalorder %s277, %s280
    %p289 = scmp.eq.s32.totalorder %s20, 3
    %p290 = por %p288, %p289
    %p291 = scmp.ne.s32.totalorder %s280, %s281
    %p292 = scmp.eq.s32.totalorder %s20, 0
    %p293 = por %p291, %p292
    %p294 = scmp.ne.s32.totalorder %s280, %s281
    %p295 = scmp.eq.s32.totalorder %s21, 3
    %p296 = por %p294, %p295
    %p298 = scmp.ne.s32.totalorder %s281, %s297
    %p299 = scmp.eq.s32.totalorder %s21, 0
    %p300 = por %p298, %p299
    %p301 = scmp.le.s32.totalorder 1, %s15
    %p302 = scmp.lt.s32.totalorder %s15, 5
    %p303 = pnand %p301, %p302
    %p304 = pneg %p303
    // Predicated region
    $region9: #{illumination_corrector.1} parent=5 // pred_check
      _
    $region10: #{illumination_corrector.1} parent=5 // pred_check_branch
      %306 = sbr.rel (%p303) target = $region12
    $region11: #{illumination_corrector.1} parent=5 // pred_region
      %s307 = ssub.s32 %s15, 1
    $region12: #{illumination_corrector.1} parent=5 // pred_fallthru
      _
    %p308 = scmp.lt.s32.totalorder %s15, 4
    // Predicated region
    $region13: #{illumination_corrector.1} parent=5 // pred_check
      %p309 = pneg %p308
    $region14: #{illumination_corrector.1} parent=5 // pred_check_branch
      %311 = sbr.rel (%p309) target = $region16
    $region15: #{illumination_corrector.1} parent=5 // pred_region
      // Predicated region
      $region17: #{illumination_corrector.1} parent=15 // pred_check
        %p312 = pneg %p49
      $region18: #{illumination_corrector.1} parent=15 // pred_check_branch
        %314 = sbr.rel (%p312) target = $region20
      $region19: #{illumination_corrector.1} parent=15 // pred_region
        %p315 = scmp.lt.s32.totalorder %s22, 1
        %s316 = scalar_select %p315, %s22, 1
        %p317 = scmp.lt.s32.totalorder %s23, 1
        %s318 = scalar_select %p317, %s23, 1
        %s319 = smul.addr %s316, 2
        %s320 = sadd.s32 %s318, %s319
        %s321 = smul.addr %s320, 4
        %s322 = scalar_lea.vmem %s0, %s321
      $region20: #{illumination_corrector.1} parent=15 // pred_fallthru
        _
      // Predicated region
      $region21: #{illumination_corrector.1} parent=15 // pred_check
        %p323 = pneg %p77
      $region22: #{illumination_corrector.1} parent=15 // pred_check_branch
        %325 = sbr.rel (%p323) target = $region24
      $region23: #{illumination_corrector.1} parent=15 // pred_region
        %p326 = scmp.lt.s32.totalorder %s22, 1
        %s327 = scalar_select %p326, %s22, 1
        %p328 = scmp.lt.s32.totalorder %s23, 1
        %s329 = scalar_select %p328, %s23, 1
        %s330 = smul.addr %s327, 2
        %s331 = sadd.s32 %s329, %s330
        %s332 = scalar_lea.vmem %s1, %s331
      $region24: #{illumination_corrector.1} parent=15 // pred_fallthru
        _
      // Predicated region
      $region25: #{illumination_corrector.1} parent=15 // pred_check
        %p333 = pneg %p103
      $region26: #{illumination_corrector.1} parent=15 // pred_check_branch
        %335 = sbr.rel (%p333) target = $region28
      $region27: #{illumination_corrector.1} parent=15 // pred_region
        %p336 = scmp.lt.s32.totalorder %s22, 1
        %s337 = scalar_select %p336, %s22, 1
        %s338 = smul.addr %s337, 8
        %s339 = smul.addr %s338, 8
        %s340 = scalar_lea.vmem %s2, %s339
      $region28: #{illumination_corrector.1} parent=15 // pred_fallthru
        _
      // Predicated region
      $region29: #{illumination_corrector.1} parent=15 // pred_check
        %p341 = pneg %p129
      $region30: #{illumination_corrector.1} parent=15 // pred_check_branch
        %343 = sbr.rel (%p341) target = $region32
      $region31: #{illumination_corrector.1} parent=15 // pred_region
        %p344 = scmp.lt.s32.totalorder %s22, 1
        %s345 = scalar_select %p344, %s22, 1
        %s346 = smul.addr %s345, 8
        %s347 = smul.addr %s346, 8
        %s348 = scalar_lea.vmem %s3, %s347
      $region32: #{illumination_corrector.1} parent=15 // pred_fallthru
        _
      // Predicated region
      $region33: #{illumination_corrector.1} parent=15 // pred_check
        %p349 = pneg %p155
      $region34: #{illumination_corrector.1} parent=15 // pred_check_branch
        %351 = sbr.rel (%p349) target = $region36
      $region35: #{illumination_corrector.1} parent=15 // pred_region
        %p352 = scmp.lt.s32.totalorder %s22, 1
        %s353 = scalar_select %p352, %s22, 1
        %s354 = smul.addr %s353, 8
        %s355 = smul.addr %s354, 8
        %s356 = scalar_lea.vmem %s4, %s355
      $region36: #{illumination_corrector.1} parent=15 // pred_fallthru
        _
      // Predicated region
      $region37: #{illumination_corrector.1} parent=15 // pred_check
        %p357 = pneg %p181
      $region38: #{illumination_corrector.1} parent=15 // pred_check_branch
        %359 = sbr.rel (%p357) target = $region40
      $region39: #{illumination_corrector.1} parent=15 // pred_region
        %p360 = scmp.lt.s32.totalorder %s22, 1
        %s361 = scalar_select %p360, %s22, 1
        %s362 = smul.addr %s361, 8
        %s363 = smul.addr %s362, 4
        %s364 = scalar_lea.vmem %s5, %s363
      $region40: #{illumination_corrector.1} parent=15 // pred_fallthru
        _
      // Predicated region
      $region41: #{illumination_corrector.1} parent=15 // pred_check
        %p365 = pneg %p207
      $region42: #{illumination_corrector.1} parent=15 // pred_check_branch
        %367 = sbr.rel (%p365) target = $region44
      $region43: #{illumination_corrector.1} parent=15 // pred_region
        %p368 = scmp.lt.s32.totalorder %s22, 1
        %s369 = scalar_select %p368, %s22, 1
        %s370 = smul.addr %s369, 8
        %s371 = smul.addr %s370, 8
        %s372 = scalar_lea.vmem %s6, %s371
      $region44: #{illumination_corrector.1} parent=15 // pred_fallthru
        _
      // Predicated region
      $region45: #{illumination_corrector.1} parent=15 // pred_check
        %p373 = pneg %p233
      $region46: #{illumination_corrector.1} parent=15 // pred_check_branch
        %375 = sbr.rel (%p373) target = $region48
      $region47: #{illumination_corrector.1} parent=15 // pred_region
        %p376 = scmp.lt.s32.totalorder %s22, 1
        %s377 = scalar_select %p376, %s22, 1
        %s378 = smul.addr %s377, 2
        %s379 = scalar_lea.vmem %s7, %s378
      $region48: #{illumination_corrector.1} parent=15 // pred_fallthru
        _
      // Predicated region
      $region49: #{illumination_corrector.1} parent=15 // pred_check
        %p380 = pneg %p259
      $region50: #{illumination_corrector.1} parent=15 // pred_check_branch
        %382 = sbr.rel (%p380) target = $region52
      $region51: #{illumination_corrector.1} parent=15 // pred_region
        %p383 = scmp.lt.s32.totalorder %s22, 1
        %s384 = scalar_select %p383, %s22, 1
        %s385 = smul.addr %s384, 4
        %s386 = scalar_lea.vmem %s8, %s385
      $region52: #{illumination_corrector.1} parent=15 // pred_fallthru
        _
    $region16: #{illumination_corrector.1} parent=5 // pred_fallthru
      _
    %p387 = scmp.le.s32.totalorder 1, %s15
    %p388 = scmp.lt.s32.totalorder %s15, 5
    %p389 = pnand %p387, %p388
    %p390 = pneg %p389
    // Predicated region
    $region53: #{illumination_corrector.1} parent=5 // pred_check
      _
    $region54: #{illumination_corrector.1} parent=5 // pred_check_branch
      %392 = sbr.rel (%p389) target = $region56
    $region55: #{illumination_corrector.1} parent=5 // pred_region
      %s393 = ssub.s32 %s15, 1
      %p394 = scmp.lt.s32.totalorder %s24, 1
      %s395 = scalar_select %p394, %s24, 1
      %p396 = scmp.lt.s32.totalorder %s25, 1
      %s397 = scalar_select %p396, %s25, 1
      %s398 = smul.addr %s395, 2
      %s399 = sadd.s32 %s397, %s398
      %s400 = smul.addr %s399, 4
      %s401 = scalar_lea.vmem %s0, %s400
      %p402 = pneg %p55
      %p403 = pneg %p52
      %p404 = scmp.lt.s32.totalorder %s24, 1
      %s405 = scalar_select %p404, %s24, 1
      %p406 = scmp.lt.s32.totalorder %s25, 1
      %s407 = scalar_select %p406, %s25, 1
      %s408 = smul.addr %s405, 2
      %s409 = sadd.s32 %s407, %s408
      %s410 = scalar_lea.vmem %s1, %s409
      %p411 = pneg %p83
      %p412 = pneg %p80
      %p413 = scmp.lt.s32.totalorder %s24, 1
      %s414 = scalar_select %p413, %s24, 1
      %s415 = smul.addr %s414, 8
      %s416 = smul.addr %s415, 8
      %s417 = scalar_lea.vmem %s2, %s416
      %p418 = pneg %p109
      %p419 = pneg %p106
      %p420 = scmp.lt.s32.totalorder %s24, 1
      %s421 = scalar_select %p420, %s24, 1
      %s422 = smul.addr %s421, 8
      %s423 = smul.addr %s422, 8
      %s424 = scalar_lea.vmem %s3, %s423
      %p425 = pneg %p135
      %p426 = pneg %p132
      %p427 = scmp.lt.s32.totalorder %s24, 1
      %s428 = scalar_select %p427, %s24, 1
      %s429 = smul.addr %s428, 8
      %s430 = smul.addr %s429, 8
      %s431 = scalar_lea.vmem %s4, %s430
      %p432 = pneg %p161
      %p433 = pneg %p158
      %p434 = scmp.lt.s32.totalorder %s24, 1
      %s435 = scalar_select %p434, %s24, 1
      %s436 = smul.addr %s435, 8
      %s437 = smul.addr %s436, 4
      %s438 = scalar_lea.vmem %s5, %s437
      %p439 = pneg %p187
      %p440 = pneg %p184
      %p441 = scmp.lt.s32.totalorder %s24, 1
      %s442 = scalar_select %p441, %s24, 1
      %s443 = smul.addr %s442, 8
      %s444 = smul.addr %s443, 8
      %s445 = scalar_lea.vmem %s6, %s444
      %p446 = pneg %p213
      %p447 = pneg %p210
      %p448 = scmp.lt.s32.totalorder %s24, 1
      %s449 = scalar_select %p448, %s24, 1
      %s450 = smul.addr %s449, 2
      %s451 = scalar_lea.vmem %s7, %s450
      %p452 = pneg %p239
      %p453 = pneg %p236
      %p454 = scmp.lt.s32.totalorder %s24, 1
      %s455 = scalar_select %p454, %s24, 1
      %s456 = smul.addr %s455, 4
      %s457 = scalar_lea.vmem %s8, %s456
      %p458 = pneg %p265
      %p459 = pneg %p262
      %p460 = pneg %p293
      %p461 = pneg %p290
      %p462 = scmp.lt.s32.totalorder %s24, 1
      %s463 = scalar_select %p462, %s24, 1
      %p464 = scmp.lt.s32.totalorder %s25, 1
      %s465 = scalar_select %p464, %s25, 1
      %s466 = smul.addr %s463, 2
      %s467 = sadd.s32 %s465, %s466
      %s468 = smul.addr %s467, 4
      %s469 = scalar_lea.vmem %s9, %s468
      %p470 = scmp.lt.s32.totalorder %s24, 1
      %s471 = scalar_select %p470, %s24, 1
      %p472 = scmp.lt.s32.totalorder %s25, 1
      %s473 = scalar_select %p472, %s25, 1
      %s474 = smul.addr %s471, 2
      %s475 = sadd.s32 %s473, %s474
      %s476 = smul.addr %s475, 4
      %s477 = scalar_lea.vmem %s0, %s476
      %p478 = scmp.lt.s32.totalorder %s24, 1
      %s479 = scalar_select %p478, %s24, 1
      %p480 = scmp.lt.s32.totalorder %s25, 1
      %s481 = scalar_select %p480, %s25, 1
      %s482 = smul.addr %s479, 2
      %s483 = sadd.s32 %s481, %s482
      %s484 = scalar_lea.vmem %s1, %s483
      %p485 = scmp.lt.s32.totalorder %s24, 1
      %s486 = scalar_select %p485, %s24, 1
      %s487 = smul.addr %s486, 8
      %s488 = smul.addr %s487, 8
      %s489 = scalar_lea.vmem %s2, %s488
      %p490 = scmp.lt.s32.totalorder %s24, 1
      %s491 = scalar_select %p490, %s24, 1
      %s492 = smul.addr %s491, 8
      %s493 = smul.addr %s492, 8
      %s494 = scalar_lea.vmem %s3, %s493
      %p495 = scmp.lt.s32.totalorder %s24, 1
      %s496 = scalar_select %p495, %s24, 1
      %s497 = smul.addr %s496, 8
      %s498 = smul.addr %s497, 8
      %s499 = scalar_lea.vmem %s4, %s498
      %p500 = scmp.lt.s32.totalorder %s24, 1
      %s501 = scalar_select %p500, %s24, 1
      %s502 = smul.addr %s501, 8
      %s503 = smul.addr %s502, 4
      %s504 = scalar_lea.vmem %s5, %s503
      %p505 = scmp.lt.s32.totalorder %s24, 1
      %s506 = scalar_select %p505, %s24, 1
      %s507 = smul.addr %s506, 8
      %s508 = smul.addr %s507, 8
      %s509 = scalar_lea.vmem %s6, %s508
      %p510 = scmp.lt.s32.totalorder %s24, 1
      %s511 = scalar_select %p510, %s24, 1
      %s512 = smul.addr %s511, 2
      %s513 = scalar_lea.vmem %s7, %s512
      %p514 = scmp.lt.s32.totalorder %s24, 1
      %s515 = scalar_select %p514, %s24, 1
      %s516 = smul.addr %s515, 4
      %s517 = scalar_lea.vmem %s8, %s516
      %p518 = scmp.lt.s32.totalorder %s24, 1
      %s519 = scalar_select %p518, %s24, 1
      %p520 = scmp.lt.s32.totalorder %s25, 1
      %s521 = scalar_select %p520, %s25, 1
      %s522 = smul.addr %s519, 2
      %s523 = sadd.s32 %s521, %s522
      %s524 = smul.addr %s523, 4
      %s525 = scalar_lea.vmem %s9, %s524
      %v527 = vld [vmem:[%s477] sm:$0x7]
      %v528 = vld [vmem:[%s484] sm:$0x1]
      %v529 = vld [vmem:[%s489] sm:$0xff]
      %v530 = vld [vmem:[%s489 + $0x8] sm:$0xff]
      %v531 = vld [vmem:[%s489 + $0x10] sm:$0xff]
      %v532 = vld [vmem:[%s489 + $0x18] sm:$0xff]
      %v533 = vld [vmem:[%s489 + $0x20] sm:$0xff]
      %v534 = vld [vmem:[%s489 + $0x28] sm:$0xff]
      %v535 = vld [vmem:[%s489 + $0x30] sm:$0xff]
      %v536 = vld [vmem:[%s489 + $0x38] sm:$0xff]
      %v537 = vld [vmem:[%s494] sm:$0xff]
      %v538 = vld [vmem:[%s494 + $0x8] sm:$0xff]
      %v539 = vld [vmem:[%s494 + $0x10] sm:$0xff]
      %v540 = vld [vmem:[%s494 + $0x18] sm:$0xff]
      %v541 = vld [vmem:[%s494 + $0x20] sm:$0xff]
      %v542 = vld [vmem:[%s494 + $0x28] sm:$0xff]
      %v543 = vld [vmem:[%s494 + $0x30] sm:$0xff]
      %v544 = vld [vmem:[%s494 + $0x38] sm:$0xff]
      %vm545 = vcmask 7168
      %v547 = vsel %vm545, %v537, 0
      %v550 = vsel %vm545, %v538, 0
      %v553 = vsel %vm545, %v539, 0
      %v556 = vsel %vm545, %v540, 0
      %v559 = vsel %vm545, %v541, 0
      %v562 = vsel %vm545, %v542, 0
      %v565 = vsel %vm545, %v543, 0
      %v568 = vsel %vm545, %v544, 0
      %vm570 = vcmask 1040384
      %v572 = vsel %vm570, %v528, 0
      %574 = vmatprep.subr.mxu0 0.0
      %575 = vmatpush1.msra.mxu0 %v572
      %576 = vmatprep.subr.mxu0 0.0
      %577 = vmatpush1.msra.mxu0 0.0
      %578 = vmatprep.subr.mxu0 0.0
      %579 = vmatpush1.msra.mxu0 0.0
      %580 = vmatprep.subr.mxu0 0.0
      %581 = vmatpush1.msra.mxu0 0.0
      %582 = vmatprep.subr.mxu0 0.0
      %583 = vmatpush1.msra.mxu0 0.0
      %584 = vmatprep.subr.mxu0 0.0
      %585 = vmatpush1.msra.mxu0 0.0
      %586 = vmatprep.subr.mxu0 0.0
      %587 = vmatpush1.msra.mxu0 0.0
      %588 = vmatprep.subr.mxu0 0.0
      %589 = vmatpush1.msra.mxu0 0.0
      %590 = vmatprep.subr.mxu0 0.0
      %591 = vmatpush1.msra.mxu0 0.0
      %592 = vmatprep.subr.mxu0 0.0
      %593 = vmatpush1.msra.mxu0 0.0
      %594 = vmatprep.subr.mxu0 0.0
      %595 = vmatpush1.msra.mxu0 0.0
      %596 = vmatprep.subr.mxu0 0.0
      %597 = vmatpush1.msra.mxu0 0.0
      %598 = vmatprep.subr.mxu0 0.0
      %599 = vmatpush1.msra.mxu0 0.0
      %600 = vmatprep.subr.mxu0 0.0
      %601 = vmatpush1.msra.mxu0 0.0
      %602 = vmatprep.subr.mxu0 0.0
      %603 = vmatpush1.msra.mxu0 0.0
      %604 = vmatprep.subr.mxu0 0.0
      %605 = vmatpush1.msra.mxu0 0.0
      %606 = vmatprep.subr.mxu0 0.0
      %607 = vmatpush1.msra.mxu0 0.0
      %608 = vmatprep.subr.mxu0 0.0
      %609 = vmatpush1.msra.mxu0 0.0
      %610 = vmatprep.subr.mxu0 0.0
      %611 = vmatpush1.msra.mxu0 0.0
      %612 = vmatprep.subr.mxu0 0.0
      %613 = vmatpush1.msra.mxu0 0.0
      %614 = vmatprep.subr.mxu0 0.0
      %615 = vmatpush1.msra.mxu0 0.0
      %616 = vmatprep.subr.mxu0 0.0
      %617 = vmatpush1.msra.mxu0 0.0
      %618 = vmatprep.subr.mxu0 0.0
      %619 = vmatpush1.msra.mxu0 0.0
      %620 = vmatprep.subr.mxu0 0.0
      %621 = vmatpush1.msra.mxu0 0.0
      %622 = vmatprep.subr.mxu0 0.0
      %623 = vmatpush1.msra.mxu0 0.0
      %624 = vmatprep.subr.mxu0 0.0
      %625 = vmatpush1.msra.mxu0 0.0
      %626 = vmatprep.subr.mxu0 0.0
      %627 = vmatpush1.msra.mxu0 0.0
      %628 = vmatprep.subr.mxu0 0.0
      %629 = vmatpush1.msra.mxu0 0.0
      %630 = vmatprep.subr.mxu0 0.0
      %631 = vmatpush1.msra.mxu0 0.0
      %632 = vmatprep.subr.mxu0 0.0
      %633 = vmatpush1.msra.mxu0 0.0
      %634 = vmatprep.subr.mxu0 0.0
      %635 = vmatpush1.msra.mxu0 0.0
      %636 = vmatprep.subr.mxu0 0.0
      %637 = vmatpush1.msra.mxu0 0.0
      %638 = vmatprep.mubr.f32.mxu0 0.0
      %639 = vmatmul.mubr.f32.gmra.mrb[0].mxu0 %v547
      %v640 = vpop.f32.mrb[0].mxu0
      %v641 = vadd.f32 0.0, %v640
      %v642 = vpop.f32.mrb[0].mxu0
      %643 = vmatprep.mubr.f32.mxu0 0.0
      %644 = vmatmul.mubr.f32.gmra.mrb[0].mxu0 %v550
      %v645 = vpop.f32.mrb[0].mxu0
      %v646 = vadd.f32 0.0, %v645
      %v647 = vpop.f32.mrb[0].mxu0
      %648 = vmatprep.mubr.f32.mxu0 0.0
      %649 = vmatmul.mubr.f32.gmra.mrb[0].mxu0 %v553
      %v650 = vpop.f32.mrb[0].mxu0
      %v651 = vadd.f32 0.0, %v650
      %v652 = vpop.f32.mrb[0].mxu0
      %653 = vmatprep.mubr.f32.mxu0 0.0
      %654 = vmatmul.mubr.f32.gmra.mrb[0].mxu0 %v556
      %v655 = vpop.f32.mrb[0].mxu0
      %v656 = vadd.f32 0.0, %v655
      %v657 = vpop.f32.mrb[0].mxu0
      %658 = vmatprep.mubr.f32.mxu0 0.0
      %659 = vmatmul.mubr.f32.gmra.mrb[0].mxu0 %v559
      %v660 = vpop.f32.mrb[0].mxu0
      %v661 = vadd.f32 0.0, %v660
      %v662 = vpop.f32.mrb[0].mxu0
      %663 = vmatprep.mubr.f32.mxu0 0.0
      %664 = vmatmul.mubr.f32.gmra.mrb[0].mxu0 %v562
      %v665 = vpop.f32.mrb[0].mxu0
      %v666 = vadd.f32 0.0, %v665
      %v667 = vpop.f32.mrb[0].mxu0
      %668 = vmatprep.mubr.f32.mxu0 0.0
      %669 = vmatmul.mubr.f32.gmra.mrb[0].mxu0 %v565
      %v670 = vpop.f32.mrb[0].mxu0
      %v671 = vadd.f32 0.0, %v670
      %v672 = vpop.f32.mrb[0].mxu0
      %673 = vmatprep.mubr.f32.mxu0 0.0
      %674 = vmatmul.mubr.f32.gmra.mrb[0].mxu0 %v568
      %v675 = vpop.f32.mrb[0].mxu0
      %v676 = vadd.f32 0.0, %v675
      %v677 = vpop.f32.mrb[0].mxu0
      %678 = vdwg.mxu0
      %vm679 = vcmask 23552
      %v681 = vsel %vm679, %v529, 0
      %v684 = vsel %vm679, %v530, 0
      %v687 = vsel %vm679, %v531, 0
      %v690 = vsel %vm679, %v532, 0
      %v693 = vsel %vm679, %v533, 0
      %v696 = vsel %vm679, %v534, 0
      %v699 = vsel %vm679, %v535, 0
      %v702 = vsel %vm679, %v536, 0
      %vm704 = vcmask 1042432
      %v706 = vsel %vm704, %v527, 0
      %708 = vmatprep.subr.mxu0 0.0
      %709 = vmatpush1.msra.mxu0 %v706
      %710 = vmatprep.subr.mxu0 0.0
      %711 = vmatpush1.msra.mxu0 0.0
      %712 = vmatprep.subr.mxu0 0.0
      %713 = vmatpush1.msra.mxu0 0.0
      %714 = vmatprep.subr.mxu0 0.0
      %715 = vmatpush1.msra.mxu0 0.0
      %716 = vmatprep.subr.mxu0 0.0
      %717 = vmatpush1.msra.mxu0 0.0
      %718 = vmatprep.subr.mxu0 0.0
      %719 = vmatpush1.msra.mxu0 0.0
      %720 = vmatprep.subr.mxu0 0.0
      %721 = vmatpush1.msra.mxu0 0.0
      %722 = vmatprep.subr.mxu0 0.0
      %723 = vmatpush1.msra.mxu0 0.0
      %724 = vmatprep.subr.mxu0 0.0
      %725 = vmatpush1.msra.mxu0 0.0
      %726 = vmatprep.subr.mxu0 0.0
      %727 = vmatpush1.msra.mxu0 0.0
      %728 = vmatprep.subr.mxu0 0.0
      %729 = vmatpush1.msra.mxu0 0.0
      %730 = vmatprep.subr.mxu0 0.0
      %731 = vmatpush1.msra.mxu0 0.0
      %732 = vmatprep.subr.mxu0 0.0
      %733 = vmatpush1.msra.mxu0 0.0
      %734 = vmatprep.subr.mxu0 0.0
      %735 = vmatpush1.msra.mxu0 0.0
      %736 = vmatprep.subr.mxu0 0.0
      %737 = vmatpush1.msra.mxu0 0.0
      %738 = vmatprep.subr.mxu0 0.0
      %739 = vmatpush1.msra.mxu0 0.0
      %740 = vmatprep.subr.mxu0 0.0
      %741 = vmatpush1.msra.mxu0 0.0
      %742 = vmatprep.subr.mxu0 0.0
      %743 = vmatpush1.msra.mxu0 0.0
      %744 = vmatprep.subr.mxu0 0.0
      %745 = vmatpush1.msra.mxu0 0.0
      %746 = vmatprep.subr.mxu0 0.0
      %747 = vmatpush1.msra.mxu0 0.0
      %748 = vmatprep.subr.mxu0 0.0
      %749 = vmatpush1.msra.mxu0 0.0
      %750 = vmatprep.subr.mxu0 0.0
      %751 = vmatpush1.msra.mxu0 0.0
      %752 = vmatprep.subr.mxu0 0.0
      %753 = vmatpush1.msra.mxu0 0.0
      %754 = vmatprep.subr.mxu0 0.0
      %755 = vmatpush1.msra.mxu0 0.0
      %756 = vmatprep.subr.mxu0 0.0
      %757 = vmatpush1.msra.mxu0 0.0
      %758 = vmatprep.subr.mxu0 0.0
      %759 = vmatpush1.msra.mxu0 0.0
      %760 = vmatprep.subr.mxu0 0.0
      %761 = vmatpush1.msra.mxu0 0.0
      %762 = vmatprep.subr.mxu0 0.0
      %763 = vmatpush1.msra.mxu0 0.0
      %764 = vmatprep.subr.mxu0 0.0
      %765 = vmatpush1.msra.mxu0 0.0
      %766 = vmatprep.subr.mxu0 0.0
      %767 = vmatpush1.msra.mxu0 0.0
      %768 = vmatprep.subr.mxu0 0.0
      %769 = vmatpush1.msra.mxu0 0.0
      %770 = vmatprep.subr.mxu0 0.0
      %771 = vmatpush1.msra.mxu0 0.0
      %772 = vmatprep.mubr.f32.mxu0 0.0
      %773 = vmatmul.mubr.f32.gmra.mrb[0].mxu0 %v681
      %v774 = vpop.f32.mrb[0].mxu0
      %v775 = vadd.f32 %v641, %v774
      %v776 = vpop.f32.mrb[0].mxu0
      %777 = vmatprep.mubr.f32.mxu0 0.0
      %778 = vmatmul.mubr.f32.gmra.mrb[0].mxu0 %v684
      %v779 = vpop.f32.mrb[0].mxu0
      %v780 = vadd.f32 %v646, %v779
      %v781 = vpop.f32.mrb[0].mxu0
      %782 = vmatprep.mubr.f32.mxu0 0.0
      %783 = vmatmul.mubr.f32.gmra.mrb[0].mxu0 %v687
      %v784 = vpop.f32.mrb[0].mxu0
      %v785 = vadd.f32 %v651, %v784
      %v786 = vpop.f32.mrb[0].mxu0
      %787 = vmatprep.mubr.f32.mxu0 0.0
      %788 = vmatmul.mubr.f32.gmra.mrb[0].mxu0 %v690
      %v789 = vpop.f32.mrb[0].mxu0
      %v790 = vadd.f32 %v656, %v789
      %v791 = vpop.f32.mrb[0].mxu0
      %792 = vmatprep.mubr.f32.mxu0 0.0
      %793 = vmatmul.mubr.f32.gmra.mrb[0].mxu0 %v693
      %v794 = vpop.f32.mrb[0].mxu0
      %v795 = vadd.f32 %v661, %v794
      %v796 = vpop.f32.mrb[0].mxu0
      %797 = vmatprep.mubr.f32.mxu0 0.0
      %798 = vmatmul.mubr.f32.gmra.mrb[0].mxu0 %v696
      %v799 = vpop.f32.mrb[0].mxu0
      %v800 = vadd.f32 %v666, %v799
      %v801 = vpop.f32.mrb[0].mxu0
      %802 = vmatprep.mubr.f32.mxu0 0.0
      %803 = vmatmul.mubr.f32.gmra.mrb[0].mxu0 %v699
      %v804 = vpop.f32.mrb[0].mxu0
      %v805 = vadd.f32 %v671, %v804
      %v806 = vpop.f32.mrb[0].mxu0
      %807 = vmatprep.mubr.f32.mxu0 0.0
      %808 = vmatmul.mubr.f32.gmra.mrb[0].mxu0 %v702
      %v809 = vpop.f32.mrb[0].mxu0
      %v810 = vadd.f32 %v676, %v809
      %v811 = vpop.f32.mrb[0].mxu0
      %812 = vdwg.mxu0
      %v813 = vld [vmem:[%s499] sm:$0xff]
      %v814 = vld [vmem:[%s499 + $0x8] sm:$0xff]
      %v815 = vld [vmem:[%s499 + $0x10] sm:$0xff]
      %v816 = vld [vmem:[%s499 + $0x18] sm:$0xff]
      %v817 = vld [vmem:[%s499 + $0x20] sm:$0xff]
      %v818 = vld [vmem:[%s499 + $0x28] sm:$0xff]
      %v819 = vld [vmem:[%s499 + $0x30] sm:$0xff]
      %v820 = vld [vmem:[%s499 + $0x38] sm:$0xff]
      %822 = vset.pattern.permute.xlu0 0
      %823 = vperm.xlu0 %822, %v813
      %v824 = vpop.permute.xlu0 %823
      %827 = vset.pattern.permute.xlu0 0
      %828 = vperm.xlu0 %827, %v814
      %v829 = vpop.permute.xlu0 %828
      %832 = vset.pattern.permute.xlu0 0
      %833 = vperm.xlu0 %832, %v815
      %v834 = vpop.permute.xlu0 %833
      %837 = vset.pattern.permute.xlu0 0
      %838 = vperm.xlu0 %837, %v816
      %v839 = vpop.permute.xlu0 %838
      %842 = vset.pattern.permute.xlu0 0
      %843 = vperm.xlu0 %842, %v817
      %v844 = vpop.permute.xlu0 %843
      %847 = vset.pattern.permute.xlu0 0
      %848 = vperm.xlu0 %847, %v818
      %v849 = vpop.permute.xlu0 %848
      %852 = vset.pattern.permute.xlu0 0
      %853 = vperm.xlu0 %852, %v819
      %v854 = vpop.permute.xlu0 %853
      %857 = vset.pattern.permute.xlu0 0
      %858 = vperm.xlu0 %857, %v820
      %v859 = vpop.permute.xlu0 %858
      %v861 = vadd.f32 %v775, %v824
      %v862 = vadd.f32 %v780, %v829
      %v863 = vadd.f32 %v785, %v834
      %v864 = vadd.f32 %v790, %v839
      %v865 = vadd.f32 %v795, %v844
      %v866 = vadd.f32 %v800, %v849
      %v867 = vadd.f32 %v805, %v854
      %v868 = vadd.f32 %v810, %v859
      %v869 = vmul.f32 %v861, 0.5
      %v870 = vmul.f32 %v862, 0.5
      %v871 = vmul.f32 %v863, 0.5
      %v872 = vmul.f32 %v864, 0.5
      %v873 = vmul.f32 %v865, 0.5
      %v874 = vmul.f32 %v866, 0.5
      %v875 = vmul.f32 %v867, 0.5
      %v876 = vmul.f32 %v868, 0.5
      %v877 = vmul.f32 %v861, %v861
      %v878 = vmul.f32 %v862, %v862
      %v879 = vmul.f32 %v863, %v863
      %v880 = vmul.f32 %v864, %v864
      %v881 = vmul.f32 %v865, %v865
      %v882 = vmul.f32 %v866, %v866
      %v883 = vmul.f32 %v867, %v867
      %v884 = vmul.f32 %v868, %v868
      %v885 = vmul.f32 %v877, %v861
      %v886 = vmul.f32 %v878, %v862
      %v887 = vmul.f32 %v879, %v863
      %v888 = vmul.f32 %v880, %v864
      %v889 = vmul.f32 %v881, %v865
      %v890 = vmul.f32 %v882, %v866
      %v891 = vmul.f32 %v883, %v867
      %v892 = vmul.f32 %v884, %v868
      %v893 = vmul.f32 %v885, 0.044715
      %v894 = vmul.f32 %v886, 0.044715
      %v895 = vmul.f32 %v887, 0.044715
      %v896 = vmul.f32 %v888, 0.044715
      %v897 = vmul.f32 %v889, 0.044715
      %v898 = vmul.f32 %v890, 0.044715
      %v899 = vmul.f32 %v891, 0.044715
      %v900 = vmul.f32 %v892, 0.044715
      %v901 = vadd.f32 %v861, %v893
      %v902 = vadd.f32 %v862, %v894
      %v903 = vadd.f32 %v863, %v895
      %v904 = vadd.f32 %v864, %v896
      %v905 = vadd.f32 %v865, %v897
      %v906 = vadd.f32 %v866, %v898
      %v907 = vadd.f32 %v867, %v899
      %v908 = vadd.f32 %v868, %v900
      %v909 = vmul.f32 %v901, 0.7978846
      %v910 = vmul.f32 %v902, 0.7978846
      %v911 = vmul.f32 %v903, 0.7978846
      %v912 = vmul.f32 %v904, 0.7978846
      %v913 = vmul.f32 %v905, 0.7978846
      %v914 = vmul.f32 %v906, 0.7978846
      %v915 = vmul.f32 %v907, 0.7978846
      %v916 = vmul.f32 %v908, 0.7978846
      %v917 = vtanh.pop %v909
      %v918 = vtanh.pop %v910
      %v919 = vtanh.pop %v911
      %v920 = vtanh.pop %v912
      %v921 = vtanh.pop %v913
      %v922 = vtanh.pop %v914
      %v923 = vtanh.pop %v915
      %v924 = vtanh.pop %v916
      %v925 = vadd.f32 %v917, 1.0
      %v926 = vadd.f32 %v918, 1.0
      %v927 = vadd.f32 %v919, 1.0
      %v928 = vadd.f32 %v920, 1.0
      %v929 = vadd.f32 %v921, 1.0
      %v930 = vadd.f32 %v922, 1.0
      %v931 = vadd.f32 %v923, 1.0
      %v932 = vadd.f32 %v924, 1.0
      %v933 = vmul.f32 %v869, %v925
      %v934 = vmul.f32 %v870, %v926
      %v935 = vmul.f32 %v871, %v927
      %v936 = vmul.f32 %v872, %v928
      %v937 = vmul.f32 %v873, %v929
      %v938 = vmul.f32 %v874, %v930
      %v939 = vmul.f32 %v875, %v931
      %v940 = vmul.f32 %v876, %v932
      %v941 = vpack.c.bf16 %v934, %v933
      %v942 = vpack.c.bf16 %v936, %v935
      %v943 = vpack.c.bf16 %v938, %v937
      %v944 = vpack.c.bf16 %v940, %v939
      %v945 = vld [vmem:[%s504] sm:$0xf]
      %v946 = vld [vmem:[%s504 + $0x4] sm:$0xf]
      %v947 = vld [vmem:[%s504 + $0x8] sm:$0xf]
      %v948 = vld [vmem:[%s504 + $0xc] sm:$0xf]
      %v949 = vld [vmem:[%s504 + $0x10] sm:$0xf]
      %v950 = vld [vmem:[%s504 + $0x14] sm:$0xf]
      %v951 = vld [vmem:[%s504 + $0x18] sm:$0xf]
      %v952 = vld [vmem:[%s504 + $0x1c] sm:$0xf]
      %v953 = vld [vmem:[%s509] sm:$0xff]
      %v954 = vld [vmem:[%s509 + $0x8] sm:$0xff]
      %v955 = vld [vmem:[%s509 + $0x10] sm:$0xff]
      %v956 = vld [vmem:[%s509 + $0x18] sm:$0xff]
      %v957 = vld [vmem:[%s509 + $0x20] sm:$0xff]
      %v958 = vld [vmem:[%s509 + $0x28] sm:$0xff]
      %v959 = vld [vmem:[%s509 + $0x30] sm:$0xff]
      %v960 = vld [vmem:[%s509 + $0x38] sm:$0xff]
      %962 = vset.pattern.permute.xlu0 0
      %963 = vperm.xlu0 %962, %v953
      %v964 = vpop.permute.xlu0 %963
      %967 = vset.pattern.permute.xlu0 0
      %968 = vperm.xlu0 %967, %v954
      %v969 = vpop.permute.xlu0 %968
      %972 = vset.pattern.permute.xlu0 0
      %973 = vperm.xlu0 %972, %v955
      %v974 = vpop.permute.xlu0 %973
      %977 = vset.pattern.permute.xlu0 0
      %978 = vperm.xlu0 %977, %v956
      %v979 = vpop.permute.xlu0 %978
      %982 = vset.pattern.permute.xlu0 0
      %983 = vperm.xlu0 %982, %v957
      %v984 = vpop.permute.xlu0 %983
      %987 = vset.pattern.permute.xlu0 0
      %988 = vperm.xlu0 %987, %v958
      %v989 = vpop.permute.xlu0 %988
      %992 = vset.pattern.permute.xlu0 0
      %993 = vperm.xlu0 %992, %v959
      %v994 = vpop.permute.xlu0 %993
      %997 = vset.pattern.permute.xlu0 0
      %998 = vperm.xlu0 %997, %v960
      %v999 = vpop.permute.xlu0 %998
      %v1009 = vunpack.c.l.b16 %v945
      %v1010 = vunpack.c.l.b16 %v946
      %v1011 = vunpack.c.l.b16 %v947
      %v1012 = vunpack.c.l.b16 %v948
      %v1013 = vunpack.c.l.b16 %v949
      %v1014 = vunpack.c.l.b16 %v950
      %v1015 = vunpack.c.l.b16 %v951
      %v1016 = vunpack.c.l.b16 %v952
      %v1017 = vpack.c.b16 %v1010, %v1009
      %v1018 = vpack.c.b16 %v1012, %v1011
      %v1019 = vpack.c.b16 %v1014, %v1013
      %v1020 = vpack.c.b16 %v1016, %v1015
      %vm1021 = vcmask 523264
      %v1023 = vsel %vm1021, %v1017, 0
      %v1026 = vsel %vm1021, %v1018, 0
      %v1029 = vsel %vm1021, %v1019, 0
      %v1032 = vsel %vm1021, %v1020, 0
      %1034 = vmatprep.subr.bf16.mxu0 0
      %1035 = vmatpush1.bf16.msra.mxu0 %v941
      %1036 = vmatprep.subr.bf16.mxu0 0
      %1037 = vmatpush1.bf16.msra.mxu0 %v942
      %1038 = vmatprep.subr.bf16.mxu0 0
      %1039 = vmatpush1.bf16.msra.mxu0 %v943
      %1040 = vmatprep.subr.bf16.mxu0 0
      %1041 = vmatpush1.bf16.msra.mxu0 %v944
      %1042 = vmatprep.subr.bf16.mxu0 0
      %1043 = vmatpush1.bf16.msra.mxu0 0
      %1044 = vmatprep.subr.bf16.mxu0 0
      %1045 = vmatpush1.bf16.msra.mxu0 0
      %1046 = vmatprep.subr.bf16.mxu0 0
      %1047 = vmatpush1.bf16.msra.mxu0 0
      %1048 = vmatprep.subr.bf16.mxu0 0
      %1049 = vmatpush1.bf16.msra.mxu0 0
      %1050 = vmatprep.subr.bf16.mxu0 0
      %1051 = vmatpush1.bf16.msra.mxu0 0
      %1052 = vmatprep.subr.bf16.mxu0 0
      %1053 = vmatpush1.bf16.msra.mxu0 0
      %1054 = vmatprep.subr.bf16.mxu0 0
      %1055 = vmatpush1.bf16.msra.mxu0 0
      %1056 = vmatprep.subr.bf16.mxu0 0
      %1057 = vmatpush1.bf16.msra.mxu0 0
      %1058 = vmatprep.subr.bf16.mxu0 0
      %1059 = vmatpush1.bf16.msra.mxu0 0
      %1060 = vmatprep.subr.bf16.mxu0 0
      %1061 = vmatpush1.bf16.msra.mxu0 0
      %1062 = vmatprep.subr.bf16.mxu0 0
      %1063 = vmatpush1.bf16.msra.mxu0 0
      %1064 = vmatprep.subr.bf16.mxu0 0
      %1065 = vmatpush1.bf16.msra.mxu0 0
      %1066 = vmatprep.mubr.bf16.mxu0 0
      %1067 = vmatmul.mubr.bf16.gmra.mrb[0].mxu0 %v1023
      %v1068 = vpop.f32.mrb[0].mxu0
      %v1069 = vadd.f32 %v964, %v1068
      %v1070 = vpop.f32.mrb[0].mxu0
      %v1071 = vpop.f32.mrb[0].mxu0
      %v1072 = vadd.f32 %v969, %v1071
      %v1073 = vpop.f32.mrb[0].mxu0
      %1074 = vmatprep.mubr.bf16.mxu0 0
      %1075 = vmatmul.mubr.bf16.gmra.mrb[0].mxu0 %v1026
      %v1076 = vpop.f32.mrb[0].mxu0
      %v1077 = vadd.f32 %v974, %v1076
      %v1078 = vpop.f32.mrb[0].mxu0
      %v1079 = vpop.f32.mrb[0].mxu0
      %v1080 = vadd.f32 %v979, %v1079
      %v1081 = vpop.f32.mrb[0].mxu0
      %1082 = vmatprep.mubr.bf16.mxu0 0
      %1083 = vmatmul.mubr.bf16.gmra.mrb[0].mxu0 %v1029
      %v1084 = vpop.f32.mrb[0].mxu0
      %v1085 = vadd.f32 %v984, %v1084
      %v1086 = vpop.f32.mrb[0].mxu0
      %v1087 = vpop.f32.mrb[0].mxu0
      %v1088 = vadd.f32 %v989, %v1087
      %v1089 = vpop.f32.mrb[0].mxu0
      %1090 = vmatprep.mubr.bf16.mxu0 0
      %1091 = vmatmul.mubr.bf16.gmra.mrb[0].mxu0 %v1032
      %v1092 = vpop.f32.mrb[0].mxu0
      %v1093 = vadd.f32 %v994, %v1092
      %v1094 = vpop.f32.mrb[0].mxu0
      %v1095 = vpop.f32.mrb[0].mxu0
      %v1096 = vadd.f32 %v999, %v1095
      %v1097 = vpop.f32.mrb[0].mxu0
      %1098 = vdwg.mxu0
      %v1099 = vmul.f32 %v1069, 0.5
      %v1100 = vmul.f32 %v1072, 0.5
      %v1101 = vmul.f32 %v1077, 0.5
      %v1102 = vmul.f32 %v1080, 0.5
      %v1103 = vmul.f32 %v1085, 0.5
      %v1104 = vmul.f32 %v1088, 0.5
      %v1105 = vmul.f32 %v1093, 0.5
      %v1106 = vmul.f32 %v1096, 0.5
      %v1107 = vmul.f32 %v1069, %v1069
      %v1108 = vmul.f32 %v1072, %v1072
      %v1109 = vmul.f32 %v1077, %v1077
      %v1110 = vmul.f32 %v1080, %v1080
      %v1111 = vmul.f32 %v1085, %v1085
      %v1112 = vmul.f32 %v1088, %v1088
      %v1113 = vmul.f32 %v1093, %v1093
      %v1114 = vmul.f32 %v1096, %v1096
      %v1115 = vmul.f32 %v1107, %v1069
      %v1116 = vmul.f32 %v1108, %v1072
      %v1117 = vmul.f32 %v1109, %v1077
      %v1118 = vmul.f32 %v1110, %v1080
      %v1119 = vmul.f32 %v1111, %v1085
      %v1120 = vmul.f32 %v1112, %v1088
      %v1121 = vmul.f32 %v1113, %v1093
      %v1122 = vmul.f32 %v1114, %v1096
      %v1123 = vmul.f32 %v1115, 0.044715
      %v1124 = vmul.f32 %v1116, 0.044715
      %v1125 = vmul.f32 %v1117, 0.044715
      %v1126 = vmul.f32 %v1118, 0.044715
      %v1127 = vmul.f32 %v1119, 0.044715
      %v1128 = vmul.f32 %v1120, 0.044715
      %v1129 = vmul.f32 %v1121, 0.044715
      %v1130 = vmul.f32 %v1122, 0.044715
      %v1131 = vadd.f32 %v1069, %v1123
      %v1132 = vadd.f32 %v1072, %v1124
      %v1133 = vadd.f32 %v1077, %v1125
      %v1134 = vadd.f32 %v1080, %v1126
      %v1135 = vadd.f32 %v1085, %v1127
      %v1136 = vadd.f32 %v1088, %v1128
      %v1137 = vadd.f32 %v1093, %v1129
      %v1138 = vadd.f32 %v1096, %v1130
      %v1139 = vmul.f32 %v1131, 0.7978846
      %v1140 = vmul.f32 %v1132, 0.7978846
      %v1141 = vmul.f32 %v1133, 0.7978846
      %v1142 = vmul.f32 %v1134, 0.7978846
      %v1143 = vmul.f32 %v1135, 0.7978846
      %v1144 = vmul.f32 %v1136, 0.7978846
      %v1145 = vmul.f32 %v1137, 0.7978846
      %v1146 = vmul.f32 %v1138, 0.7978846
      %v1147 = vtanh.pop %v1139
      %v1148 = vtanh.pop %v1140
      %v1149 = vtanh.pop %v1141
      %v1150 = vtanh.pop %v1142
      %v1151 = vtanh.pop %v1143
      %v1152 = vtanh.pop %v1144
      %v1153 = vtanh.pop %v1145
      %v1154 = vtanh.pop %v1146
      %v1155 = vadd.f32 %v1147, 1.0
      %v1156 = vadd.f32 %v1148, 1.0
      %v1157 = vadd.f32 %v1149, 1.0
      %v1158 = vadd.f32 %v1150, 1.0
      %v1159 = vadd.f32 %v1151, 1.0
      %v1160 = vadd.f32 %v1152, 1.0
      %v1161 = vadd.f32 %v1153, 1.0
      %v1162 = vadd.f32 %v1154, 1.0
      %v1163 = vmul.f32 %v1099, %v1155
      %v1164 = vmul.f32 %v1100, %v1156
      %v1165 = vmul.f32 %v1101, %v1157
      %v1166 = vmul.f32 %v1102, %v1158
      %v1167 = vmul.f32 %v1103, %v1159
      %v1168 = vmul.f32 %v1104, %v1160
      %v1169 = vmul.f32 %v1105, %v1161
      %v1170 = vmul.f32 %v1106, %v1162
      %v1171 = vpack.c.bf16 %v1164, %v1163
      %v1172 = vpack.c.bf16 %v1166, %v1165
      %v1173 = vpack.c.bf16 %v1168, %v1167
      %v1174 = vpack.c.bf16 %v1170, %v1169
      %v1175 = vld [vmem:[%s513] sm:$0x3]
      %v1176 = vld [vmem:[%s517] sm:$0x7]
      %1178 = vset.pattern.permute.xlu0 0
      %1179 = vperm.xlu0 %1178, %v1176
      %v1180 = vpop.permute.xlu0 %1179
      %v1183 = vsel %vm1021, %v1175, 0
      %1185 = vmatprep.subr.bf16.mxu0 0
      %1186 = vmatpush1.bf16.msra.mxu0 %v1171
      %1187 = vmatprep.subr.bf16.mxu0 0
      %1188 = vmatpush1.bf16.msra.mxu0 %v1172
      %1189 = vmatprep.subr.bf16.mxu0 0
      %1190 = vmatpush1.bf16.msra.mxu0 %v1173
      %1191 = vmatprep.subr.bf16.mxu0 0
      %1192 = vmatpush1.bf16.msra.mxu0 %v1174
      %1193 = vmatprep.subr.bf16.mxu0 0
      %1194 = vmatpush1.bf16.msra.mxu0 0
      %1195 = vmatprep.subr.bf16.mxu0 0
      %1196 = vmatpush1.bf16.msra.mxu0 0
      %1197 = vmatprep.subr.bf16.mxu0 0
      %1198 = vmatpush1.bf16.msra.mxu0 0
      %1199 = vmatprep.subr.bf16.mxu0 0
      %1200 = vmatpush1.bf16.msra.mxu0 0
      %1201 = vmatprep.subr.bf16.mxu0 0
      %1202 = vmatpush1.bf16.msra.mxu0 0
      %1203 = vmatprep.subr.bf16.mxu0 0
      %1204 = vmatpush1.bf16.msra.mxu0 0
      %1205 = vmatprep.subr.bf16.mxu0 0
      %1206 = vmatpush1.bf16.msra.mxu0 0
      %1207 = vmatprep.subr.bf16.mxu0 0
      %1208 = vmatpush1.bf16.msra.mxu0 0
      %1209 = vmatprep.subr.bf16.mxu0 0
      %1210 = vmatpush1.bf16.msra.mxu0 0
      %1211 = vmatprep.subr.bf16.mxu0 0
      %1212 = vmatpush1.bf16.msra.mxu0 0
      %1213 = vmatprep.subr.bf16.mxu0 0
      %1214 = vmatpush1.bf16.msra.mxu0 0
      %1215 = vmatprep.subr.bf16.mxu0 0
      %1216 = vmatpush1.bf16.msra.mxu0 0
      %1217 = vmatprep.mubr.bf16.mxu0 0
      %1218 = vmatmul.mubr.bf16.gmra.mrb[0].mxu0 %v1183
      %v1219 = vpop.f32.mrb[0].mxu0
      %v1220 = vadd.f32 %v1180, %v1219
      %v1221 = vpop.f32.mrb[0].mxu0
      %v1222 = vpop.f32.mrb[0].mxu0
      %v1223 = vpop.f32.mrb[0].mxu0
      %1224 = vdwg.mxu0
      %v1225 = vmul.f32 %v1220, 0.5
      %v1226 = vmul.f32 %v1220, %v1220
      %v1227 = vmul.f32 %v1226, %v1220
      %v1228 = vmul.f32 %v1227, 0.044715
      %v1229 = vadd.f32 %v1220, %v1228
      %v1230 = vmul.f32 %v1229, 0.7978846
      %v1231 = vtanh.pop %v1230
      %v1232 = vadd.f32 %v1231, 1.0
      %v1233 = vmul.f32 %v1225, %v1232
      %1234 = vst [vmem:[%s525] sm:$0x7] %v1233
      %p1235 = scmp.lt.s32.totalorder %s24, 1
      %s1236 = scalar_select %p1235, %s24, 1
      %p1237 = scmp.lt.s32.totalorder %s25, 1
      %s1238 = scalar_select %p1237, %s25, 1
      %s1239 = smul.addr %s1236, 2
      %s1240 = sadd.s32 %s1238, %s1239
      %s1241 = smul.addr %s1240, 4
      %s1242 = scalar_lea.vmem %s9, %s1241
      // Predicated region
      $region57: #{illumination_corrector.1} parent=55 // pred_check
        %p1243 = pneg %p290
      $region58: #{illumination_corrector.1} parent=55 // pred_check_branch
        %1245 = sbr.rel (%p1243) target = $region60
      $region59: #{illumination_corrector.1} parent=55 // pred_region
        _
      $region60: #{illumination_corrector.1} parent=55 // pred_fallthru
        _
    $region56: #{illumination_corrector.1} parent=5 // pred_fallthru
      _
    %p1246 = scmp.le.s32.totalorder 2, %s15
    // Predicated region
    $region61: #{illumination_corrector.1} parent=5 // pred_check
      %p1247 = pneg %p1246
    $region62: #{illumination_corrector.1} parent=5 // pred_check_branch
      %1249 = sbr.rel (%p1247) target = $region64
    $region63: #{illumination_corrector.1} parent=5 // pred_region
      %s1250 = ssub.s32 %s15, 2
      // Predicated region
      $region65: #{illumination_corrector.1} parent=63 // pred_check
        %p1251 = pneg %p296
      $region66: #{illumination_corrector.1} parent=63 // pred_check_branch
        %1253 = sbr.rel (%p1251) target = $region68
      $region67: #{illumination_corrector.1} parent=63 // pred_region
        %p1254 = scmp.lt.s32.totalorder %s26, 1
        %s1255 = scalar_select %p1254, %s26, 1
        %p1256 = scmp.lt.s32.totalorder %s27, 1
        %s1257 = scalar_select %p1256, %s27, 1
        %s1258 = smul.addr %s1255, 2
        %s1259 = sadd.s32 %s1257, %s1258
        %s1260 = smul.addr %s1259, 4
        %s1261 = scalar_lea.vmem %s9, %s1260
      $region68: #{illumination_corrector.1} parent=63 // pred_fallthru
        _
    $region64: #{illumination_corrector.1} parent=5 // pred_fallthru
      _
  $region6: #{illumination_corrector.1} parent=0 // loop_footer
    %s19 = sadd.s32 1, %s15
  $region7: #{illumination_corrector.1} parent=0 // loop_footer_branch
    %14 = sbr.rel target = $region3
  $region8: #{illumination_corrector.1} parent=0 // loop_exit
    _

</llo_original>
